<compile_context>
chip_gen: v6e
topology: v6e:2x2x1
jax: 0.10.0
libtpu: 0.0.40
codegen_flags: <defaults>
</compile_context>

<pallas_src>
import jax
import jax.numpy as jnp
from jax.experimental import pallas as pl
from jax.experimental.pallas import tpu as pltpu

INPUT_SIZE = 18
HIDDEN_SIZES = [64, 128, 128, 128, 64]
OUTPUT_SIZE = 1

DEFAULT_TILE_N = 512  # rows per grid step; 512-1024 sits near the HBM roofline plateau


def mlp_kernel(x_ref,
               w1_ref, b1_ref,
               w2_ref, b2_ref,
               w3_ref, b3_ref,
               w4_ref, b4_ref,
               w5_ref, b5_ref,
               wo_ref, bo_ref,
               o_ref):
    # Feature-major: activations are (features, TILE_N), batch on the lane axis.
    h = x_ref[...].astype(jnp.bfloat16)                      # (18, TILE_N)

    # Hidden layers 1..4: bf16 MXU matmul, f32 accumulate, bias + ReLU in f32,
    # cast back to bf16 for the next matmul.
    for w_ref, b_ref in ((w1_ref, b1_ref), (w2_ref, b2_ref),
                         (w3_ref, b3_ref), (w4_ref, b4_ref)):
        y = jnp.dot(w_ref[...], h, preferred_element_type=jnp.float32) + b_ref[...]
        h = jnp.maximum(y, 0.0).astype(jnp.bfloat16)

    # Hidden layer 5: keep the result in f32 (it feeds the VPU/XLU final layer).
    y5 = jnp.dot(w5_ref[...], h, preferred_element_type=jnp.float32) + b5_ref[...]
    h5 = jnp.maximum(y5, 0.0)                                 # (64, TILE_N) f32

    # Output layer 64 -> 1 on VPU + XLU: multiply by the (64, 1) weight column and
    # reduce across sublanes rather than issuing a 1-wide MXU matmul.
    o_ref[...] = jnp.sum(h5 * wo_ref[...], axis=0, keepdims=True) + bo_ref[...]


def init_params(key):
    """PyTorch-Linear-style params: weight (out, in), bias (out,), U(+-1/sqrt(fan_in))."""
    dims = [INPUT_SIZE] + HIDDEN_SIZES + [OUTPUT_SIZE]
    params = []
    for fan_in, fan_out in zip(dims[:-1], dims[1:]):
        key, kw, kb = jax.random.split(key, 3)
        bound = 1.0 / (fan_in ** 0.5)
        w = jax.random.uniform(kw, (fan_out, fan_in), jnp.float32, -bound, bound)
        b = jax.random.uniform(kb, (fan_out,), jnp.float32, -bound, bound)
        params.append((w, b))
    return params


def mlp_forward(x, params, tile_n=DEFAULT_TILE_N):
    """x: (input_size, N) float32 — the same tensor the PyTorch forward receives.

    Returns (N, 1) float32, matching `MLP.forward` (which transposes internally).
    """
    n = x.shape[1]

    # Tile the batch (lane) axis; shrink the tile for tiny batches but keep it a
    # multiple of 128 so the output stays lane-dense (unmasked vst).
    tile_n = min(tile_n, max(128, pl.cdiv(n, 128) * 128))
    n_pad = pl.cdiv(n, tile_n) * tile_n
    if n_pad != n:
        x = jnp.pad(x, ((0, 0), (0, n_pad - n)))

    num_layers = len(params)
    flat_inputs = [x]
    flat_specs = [pl.BlockSpec((INPUT_SIZE, tile_n), lambda i: (0, i))]
    for idx, (w, b) in enumerate(params):
        if idx < num_layers - 1:
            w_arr = w.astype(jnp.bfloat16)            # (out, in): bf16 MXU operand
        else:
            w_arr = w.T.astype(jnp.float32)           # (in, 1) = (64, 1): f32 VPU operand
        b_arr = b.reshape(-1, 1).astype(jnp.float32)  # (out, 1): broadcasts over lanes
        flat_inputs.extend([w_arr, b_arr])
        # Constant index_map -> weights/biases DMA'd once, resident in VMEM across steps.
        flat_specs.extend([pl.BlockSpec(w_arr.shape, lambda i: (0, 0)),
                           pl.BlockSpec(b_arr.shape, lambda i: (0, 0))])

    out = pl.pallas_call(
        mlp_kernel,
        out_shape=jax.ShapeDtypeStruct((1, n_pad), jnp.float32),
        grid=(n_pad // tile_n,),
        in_specs=flat_specs,
        out_specs=pl.BlockSpec((1, tile_n), lambda i: (0, i)),
        compiler_params=pltpu.CompilerParams(
            dimension_semantics=("parallel",)),       # v7x megacore; no-op on v5e/v6e
    )(*flat_inputs)

    # (1, N) lane-dense kernel output -> (N, 1), matching the PyTorch module.
    return out[:, :n].reshape(n, OUTPUT_SIZE)


def mlp_reference(x, params):
    """Pure-JAX f32 reference matching the PyTorch forward exactly."""
    h = x.T
    for i, (w, b) in enumerate(params):
        h = h @ w.T + b
        if i < len(params) - 1:
            h = jnp.maximum(h, 0.0)
    return h


if __name__ == "__main__":
    key = jax.random.PRNGKey(0)
    k_params, k_x = jax.random.split(key)

    params = init_params(k_params)

    N = 16  # small batch for the smoke test
    x = jax.random.normal(k_x, (INPUT_SIZE, N), jnp.float32)  # (18, N)

    out = jax.block_until_ready(mlp_forward(x, params))
    ref = mlp_reference(x, params)

    assert out.shape == (N, OUTPUT_SIZE), out.shape
    # bf16 MXU operands with f32 accumulation -> loosened tolerance vs the f32 reference.
    max_err = float(jnp.max(jnp.abs(out - ref)))
    assert jnp.allclose(out, ref, atol=5e-2, rtol=5e-2), max_err

    print("KERNEL_OK")
</pallas_src>

<mosaic_0001>
module attributes {stable_mosaic.version = 11 : i64} {
  func.func @mlp_kernel(%arg0: i32, %arg1: memref<18x128xf32, #tpu.memory_space<vmem>>, %arg2: memref<64x18xbf16, #tpu.memory_space<vmem>>, %arg3: memref<64x1xf32, #tpu.memory_space<vmem>>, %arg4: memref<128x64xbf16, #tpu.memory_space<vmem>>, %arg5: memref<128x1xf32, #tpu.memory_space<vmem>>, %arg6: memref<128x128xbf16, #tpu.memory_space<vmem>>, %arg7: memref<128x1xf32, #tpu.memory_space<vmem>>, %arg8: memref<128x128xbf16, #tpu.memory_space<vmem>>, %arg9: memref<128x1xf32, #tpu.memory_space<vmem>>, %arg10: memref<64x128xbf16, #tpu.memory_space<vmem>>, %arg11: memref<64x1xf32, #tpu.memory_space<vmem>>, %arg12: memref<64x1xf32, #tpu.memory_space<vmem>>, %arg13: memref<1x1xf32, #tpu.memory_space<vmem>>, %arg14: memref<1x128xf32, #tpu.memory_space<vmem>>) attributes {dimension_semantics = [#tpu.dimension_semantics<parallel>], iteration_bounds = array<i64: 1>, scalar_prefetch = 0 : i64, scratch_operands = 0 : i64, tpu.core_type = #tpu.core_type<tc>, window_params = [{transform_indices = @transform_0, window_bounds = array<i64: 18, 128>}, {pipeline_mode = #tpu.pipeline_mode<synchronous>, transform_indices = @transform_1, window_bounds = array<i64: 64, 18>}, {pipeline_mode = #tpu.pipeline_mode<synchronous>, transform_indices = @transform_2, window_bounds = array<i64: 64, 1>}, {pipeline_mode = #tpu.pipeline_mode<synchronous>, transform_indices = @transform_3, window_bounds = array<i64: 128, 64>}, {pipeline_mode = #tpu.pipeline_mode<synchronous>, transform_indices = @transform_4, window_bounds = array<i64: 128, 1>}, {pipeline_mode = #tpu.pipeline_mode<synchronous>, transform_indices = @transform_5, window_bounds = array<i64: 128, 128>}, {pipeline_mode = #tpu.pipeline_mode<synchronous>, transform_indices = @transform_6, window_bounds = array<i64: 128, 1>}, {pipeline_mode = #tpu.pipeline_mode<synchronous>, transform_indices = @transform_7, window_bounds = array<i64: 128, 128>}, {pipeline_mode = #tpu.pipeline_mode<synchronous>, transform_indices = @transform_8, window_bounds = array<i64: 128, 1>}, {pipeline_mode = #tpu.pipeline_mode<synchronous>, transform_indices = @transform_9, window_bounds = array<i64: 64, 128>}, {pipeline_mode = #tpu.pipeline_mode<synchronous>, transform_indices = @transform_10, window_bounds = array<i64: 64, 1>}, {pipeline_mode = #tpu.pipeline_mode<synchronous>, transform_indices = @transform_11, window_bounds = array<i64: 64, 1>}, {pipeline_mode = #tpu.pipeline_mode<synchronous>, transform_indices = @transform_12, window_bounds = array<i64: 1, 1>}, {transform_indices = @transform_13, window_bounds = array<i64: 1, 128>}]} {
    %c0 = arith.constant 0 : index
    %c0_0 = arith.constant 0 : index
    %0 = vector.load %arg1[%c0, %c0_0] : memref<18x128xf32, #tpu.memory_space<vmem>>, vector<18x128xf32>
    %1 = arith.truncf %0 : vector<18x128xf32> to vector<18x128xbf16>
    %c0_1 = arith.constant 0 : index
    %c0_2 = arith.constant 0 : index
    %2 = vector.load %arg2[%c0_1, %c0_2] : memref<64x18xbf16, #tpu.memory_space<vmem>>, vector<64x18xbf16>
    %cst = arith.constant dense<0.000000e+00> : vector<64x128xf32>
    %3 = tpu.matmul %2, %1, %cst {dimension_numbers = #tpu.dot_dimension_numbers<[1], [0], [0], [1], [0, 0, 1, 1], [], []>} : vector<64x18xbf16>, vector<18x128xbf16>, vector<64x128xf32> -> vector<64x128xf32>
    %c0_3 = arith.constant 0 : index
    %c0_4 = arith.constant 0 : index
    %4 = vector.load %arg3[%c0_3, %c0_4] : memref<64x1xf32, #tpu.memory_space<vmem>>, vector<64x1xf32>
    %5 = vector.broadcast %4 : vector<64x1xf32> to vector<64x128xf32>
    %6 = arith.addf %3, %5 : vector<64x128xf32>
    %cst_5 = arith.constant 0.000000e+00 : f32
    %7 = vector.broadcast %cst_5 : f32 to vector<64x128xf32>
    %8 = arith.maximumf %6, %7 : vector<64x128xf32>
    %9 = arith.truncf %8 : vector<64x128xf32> to vector<64x128xbf16>
    %c0_6 = arith.constant 0 : index
    %c0_7 = arith.constant 0 : index
    %10 = vector.load %arg4[%c0_6, %c0_7] : memref<128x64xbf16, #tpu.memory_space<vmem>>, vector<128x64xbf16>
    %cst_8 = arith.constant dense<0.000000e+00> : vector<128x128xf32>
    %11 = tpu.matmul %10, %9, %cst_8 {dimension_numbers = #tpu.dot_dimension_numbers<[1], [0], [0], [1], [0, 0, 1, 1], [], []>} : vector<128x64xbf16>, vector<64x128xbf16>, vector<128x128xf32> -> vector<128x128xf32>
    %c0_9 = arith.constant 0 : index
    %c0_10 = arith.constant 0 : index
    %12 = vector.load %arg5[%c0_9, %c0_10] : memref<128x1xf32, #tpu.memory_space<vmem>>, vector<128x1xf32>
    %13 = vector.broadcast %12 : vector<128x1xf32> to vector<128x128xf32>
    %14 = arith.addf %11, %13 : vector<128x128xf32>
    %cst_11 = arith.constant 0.000000e+00 : f32
    %15 = vector.broadcast %cst_11 : f32 to vector<128x128xf32>
    %16 = arith.maximumf %14, %15 : vector<128x128xf32>
    %17 = arith.truncf %16 : vector<128x128xf32> to vector<128x128xbf16>
    %c0_12 = arith.constant 0 : index
    %c0_13 = arith.constant 0 : index
    %18 = vector.load %arg6[%c0_12, %c0_13] : memref<128x128xbf16, #tpu.memory_space<vmem>>, vector<128x128xbf16>
    %cst_14 = arith.constant dense<0.000000e+00> : vector<128x128xf32>
    %19 = tpu.matmul %18, %17, %cst_14 {dimension_numbers = #tpu.dot_dimension_numbers<[1], [0], [0], [1], [0, 0, 1, 1], [], []>} : vector<128x128xbf16>, vector<128x128xbf16>, vector<128x128xf32> -> vector<128x128xf32>
    %c0_15 = arith.constant 0 : index
    %c0_16 = arith.constant 0 : index
    %20 = vector.load %arg7[%c0_15, %c0_16] : memref<128x1xf32, #tpu.memory_space<vmem>>, vector<128x1xf32>
    %21 = vector.broadcast %20 : vector<128x1xf32> to vector<128x128xf32>
    %22 = arith.addf %19, %21 : vector<128x128xf32>
    %cst_17 = arith.constant 0.000000e+00 : f32
    %23 = vector.broadcast %cst_17 : f32 to vector<128x128xf32>
    %24 = arith.maximumf %22, %23 : vector<128x128xf32>
    %25 = arith.truncf %24 : vector<128x128xf32> to vector<128x128xbf16>
    %c0_18 = arith.constant 0 : index
    %c0_19 = arith.constant 0 : index
    %26 = vector.load %arg8[%c0_18, %c0_19] : memref<128x128xbf16, #tpu.memory_space<vmem>>, vector<128x128xbf16>
    %cst_20 = arith.constant dense<0.000000e+00> : vector<128x128xf32>
    %27 = tpu.matmul %26, %25, %cst_20 {dimension_numbers = #tpu.dot_dimension_numbers<[1], [0], [0], [1], [0, 0, 1, 1], [], []>} : vector<128x128xbf16>, vector<128x128xbf16>, vector<128x128xf32> -> vector<128x128xf32>
    %c0_21 = arith.constant 0 : index
    %c0_22 = arith.constant 0 : index
    %28 = vector.load %arg9[%c0_21, %c0_22] : memref<128x1xf32, #tpu.memory_space<vmem>>, vector<128x1xf32>
    %29 = vector.broadcast %28 : vector<128x1xf32> to vector<128x128xf32>
    %30 = arith.addf %27, %29 : vector<128x128xf32>
    %cst_23 = arith.constant 0.000000e+00 : f32
    %31 = vector.broadcast %cst_23 : f32 to vector<128x128xf32>
    %32 = arith.maximumf %30, %31 : vector<128x128xf32>
    %33 = arith.truncf %32 : vector<128x128xf32> to vector<128x128xbf16>
    %c0_24 = arith.constant 0 : index
    %c0_25 = arith.constant 0 : index
    %34 = vector.load %arg10[%c0_24, %c0_25] : memref<64x128xbf16, #tpu.memory_space<vmem>>, vector<64x128xbf16>
    %cst_26 = arith.constant dense<0.000000e+00> : vector<64x128xf32>
    %35 = tpu.matmul %34, %33, %cst_26 {dimension_numbers = #tpu.dot_dimension_numbers<[1], [0], [0], [1], [0, 0, 1, 1], [], []>} : vector<64x128xbf16>, vector<128x128xbf16>, vector<64x128xf32> -> vector<64x128xf32>
    %c0_27 = arith.constant 0 : index
    %c0_28 = arith.constant 0 : index
    %36 = vector.load %arg11[%c0_27, %c0_28] : memref<64x1xf32, #tpu.memory_space<vmem>>, vector<64x1xf32>
    %37 = vector.broadcast %36 : vector<64x1xf32> to vector<64x128xf32>
    %38 = arith.addf %35, %37 : vector<64x128xf32>
    %cst_29 = arith.constant 0.000000e+00 : f32
    %39 = vector.broadcast %cst_29 : f32 to vector<64x128xf32>
    %40 = arith.maximumf %38, %39 : vector<64x128xf32>
    %c0_30 = arith.constant 0 : index
    %c0_31 = arith.constant 0 : index
    %41 = vector.load %arg12[%c0_30, %c0_31] : memref<64x1xf32, #tpu.memory_space<vmem>>, vector<64x1xf32>
    %42 = vector.broadcast %41 : vector<64x1xf32> to vector<64x128xf32>
    %43 = arith.mulf %40, %42 : vector<64x128xf32>
    %cst_32 = arith.constant dense<0.000000e+00> : vector<128xf32>
    %44 = vector.multi_reduction <add>, %43, %cst_32 [0] : vector<64x128xf32> to vector<128xf32>
    %45 = vector.shape_cast %44 : vector<128xf32> to vector<1x128xf32>
    %c0_33 = arith.constant 0 : index
    %c0_34 = arith.constant 0 : index
    %46 = vector.load %arg13[%c0_33, %c0_34] : memref<1x1xf32, #tpu.memory_space<vmem>>, vector<1x1xf32>
    %47 = vector.broadcast %46 : vector<1x1xf32> to vector<1x128xf32>
    %48 = arith.addf %45, %47 : vector<1x128xf32>
    %c0_35 = arith.constant 0 : index
    %c0_36 = arith.constant 0 : index
    %49 = vector.load %arg14[%c0_35, %c0_36] : memref<1x128xf32, #tpu.memory_space<vmem>>, vector<1x128xf32>
    tpu.vector_store %arg14[%c0_35, %c0_36], %48 {strides = array<i32>} : memref<1x128xf32, #tpu.memory_space<vmem>>, vector<1x128xf32>,
    return
  }
  func.func @transform_0(%arg0: i32) -> (i32, i32) {
    %c0_i32 = arith.constant 0 : i32
    %c0_i32_0 = arith.constant 0 : i32
    return %c0_i32, %arg0 : i32, i32
  }
  func.func @transform_1(%arg0: i32) -> (i32, i32) {
    %c0_i32 = arith.constant 0 : i32
    %c0_i32_0 = arith.constant 0 : i32
    %c0_i32_1 = arith.constant 0 : i32
    return %c0_i32, %c0_i32_0 : i32, i32
  }
  func.func @transform_2(%arg0: i32) -> (i32, i32) {
    %c0_i32 = arith.constant 0 : i32
    %c0_i32_0 = arith.constant 0 : i32
    %c0_i32_1 = arith.constant 0 : i32
    return %c0_i32, %c0_i32_0 : i32, i32
  }
  func.func @transform_3(%arg0: i32) -> (i32, i32) {
    %c0_i32 = arith.constant 0 : i32
    %c0_i32_0 = arith.constant 0 : i32
    %c0_i32_1 = arith.constant 0 : i32
    return %c0_i32, %c0_i32_0 : i32, i32
  }
  func.func @transform_4(%arg0: i32) -> (i32, i32) {
    %c0_i32 = arith.constant 0 : i32
    %c0_i32_0 = arith.constant 0 : i32
    %c0_i32_1 = arith.constant 0 : i32
    return %c0_i32, %c0_i32_0 : i32, i32
  }
  func.func @transform_5(%arg0: i32) -> (i32, i32) {
    %c0_i32 = arith.constant 0 : i32
    %c0_i32_0 = arith.constant 0 : i32
    %c0_i32_1 = arith.constant 0 : i32
    return %c0_i32, %c0_i32_0 : i32, i32
  }
  func.func @transform_6(%arg0: i32) -> (i32, i32) {
    %c0_i32 = arith.constant 0 : i32
    %c0_i32_0 = arith.constant 0 : i32
    %c0_i32_1 = arith.constant 0 : i32
    return %c0_i32, %c0_i32_0 : i32, i32
  }
  func.func @transform_7(%arg0: i32) -> (i32, i32) {
    %c0_i32 = arith.constant 0 : i32
    %c0_i32_0 = arith.constant 0 : i32
    %c0_i32_1 = arith.constant 0 : i32
    return %c0_i32, %c0_i32_0 : i32, i32
  }
  func.func @transform_8(%arg0: i32) -> (i32, i32) {
    %c0_i32 = arith.constant 0 : i32
    %c0_i32_0 = arith.constant 0 : i32
    %c0_i32_1 = arith.constant 0 : i32
    return %c0_i32, %c0_i32_0 : i32, i32
  }
  func.func @transform_9(%arg0: i32) -> (i32, i32) {
    %c0_i32 = arith.constant 0 : i32
    %c0_i32_0 = arith.constant 0 : i32
    %c0_i32_1 = arith.constant 0 : i32
    return %c0_i32, %c0_i32_0 : i32, i32
  }
  func.func @transform_10(%arg0: i32) -> (i32, i32) {
    %c0_i32 = arith.constant 0 : i32
    %c0_i32_0 = arith.constant 0 : i32
    %c0_i32_1 = arith.constant 0 : i32
    return %c0_i32, %c0_i32_0 : i32, i32
  }
  func.func @transform_11(%arg0: i32) -> (i32, i32) {
    %c0_i32 = arith.constant 0 : i32
    %c0_i32_0 = arith.constant 0 : i32
    %c0_i32_1 = arith.constant 0 : i32
    return %c0_i32, %c0_i32_0 : i32, i32
  }
  func.func @transform_12(%arg0: i32) -> (i32, i32) {
    %c0_i32 = arith.constant 0 : i32
    %c0_i32_0 = arith.constant 0 : i32
    %c0_i32_1 = arith.constant 0 : i32
    return %c0_i32, %c0_i32_0 : i32, i32
  }
  func.func @transform_13(%arg0: i32) -> (i32, i32) {
    %c0_i32 = arith.constant 0 : i32
    %c0_i32_0 = arith.constant 0 : i32
    return %c0_i32, %arg0 : i32, i32
  }
}

</mosaic_0001>

<llo_original>
// kernel: tpu_custom_call.1
$region0: #{tpu_custom_call.1}
  #allocation0 [shape = 'u32[]', space=smem, size = 0x4, offset = 0x4, fixed_abs, tag = 'smem constant byte address 0x4 - core index']
  #allocation1 [shape = 'u32[144,128]{1,0:T(1,128)}', space=vmem, size = 0x12000, scoped, tag = 'internal scratch']
  #allocation2 [shape = 'f32[1,1]{1,0:T(1,128)S(1)}', space=vmem, size = 0x200, scoped, tag = 'scoped memory for tpu_custom_call.1']
  %s0 = inlined_call_operand.vmem [shape: f32[18,128], index: 0, kind: input, shape index: {}]
  %s1 = inlined_call_operand.vmem [shape: bf16[64,18], index: 1, kind: input, shape index: {}]
  %s2 = inlined_call_operand.vmem [shape: f32[64,1], index: 2, kind: input, shape index: {}]
  %s3 = inlined_call_operand.vmem [shape: bf16[128,64], index: 3, kind: input, shape index: {}]
  %s4 = inlined_call_operand.vmem [shape: f32[128,1], index: 4, kind: input, shape index: {}]
  %s5 = inlined_call_operand.vmem [shape: bf16[128,128], index: 5, kind: input, shape index: {}]
  %s6 = inlined_call_operand.vmem [shape: f32[128,1], index: 6, kind: input, shape index: {}]
  %s7 = inlined_call_operand.vmem [shape: bf16[128,128], index: 7, kind: input, shape index: {}]
  %s8 = inlined_call_operand.vmem [shape: f32[128,1], index: 8, kind: input, shape index: {}]
  %s9 = inlined_call_operand.vmem [shape: bf16[64,128], index: 9, kind: input, shape index: {}]
  %s10 = inlined_call_operand.vmem [shape: f32[64,1], index: 10, kind: input, shape index: {}]
  %s11 = inlined_call_operand.vmem [shape: f32[64,1], index: 11, kind: input, shape index: {}]
  %s12 = inlined_call_operand.<no memory space> [shape: f32[1,1], index: 12, kind: input, shape index: {}]
  %s13 = inlined_call_operand.hbm [shape: f32[1,128], index: 13, kind: output, shape index: {}]
  %s14 = sld [smem:[#allocation0]]
  $region62: #{tpu_custom_call.1} parent=0
    _
  %s16 = ssub.s32 1, %s14
  %s17 = scalar_select 0, %s16, %s14
  %v18 = vstv %s12
  %19 = vst [vmem:[#allocation2] sm:$0x1] %v18
  $region1: #{tpu_custom_call.1} parent=0
    #allocation3 [shape = 'u8[512]{0}', space=vmem, size = 0x400, scoped, tag = 'output window, operand 0, single buffered']
    #allocation4 [shape = 's32[1]{0}', space=sflag, size = 0x4, scoped, tag = 'scoped memory for tpu_custom_call.1']
    %20 = vsyncpa [#allocation4], 0
    // Predicated region
    $region2: #{tpu_custom_call.1} parent=1 // pred_check
      _
    $region3: #{tpu_custom_call.1} parent=1 // pred_check_branch
      %22 = sbr.rel (0) target = $region5
    $region4: #{tpu_custom_call.1} parent=1 // pred_region
      _
    $region5: #{tpu_custom_call.1} parent=1 // pred_fallthru
      _
    // Predicated region
    $region6: #{tpu_custom_call.1} parent=1 // pred_check
      _
    $region7: #{tpu_custom_call.1} parent=1 // pred_check_branch
      %24 = sbr.rel (0) target = $region9
    $region8: #{tpu_custom_call.1} parent=1 // pred_region
      _
    $region9: #{tpu_custom_call.1} parent=1 // pred_fallthru
      _
    // Predicated region
    $region10: #{tpu_custom_call.1} parent=1 // pred_check
      _
    $region11: #{tpu_custom_call.1} parent=1 // pred_check_branch
      %26 = sbr.rel (0) target = $region13
    $region12: #{tpu_custom_call.1} parent=1 // pred_region
      _
    $region13: #{tpu_custom_call.1} parent=1 // pred_fallthru
      _
    // Predicated region
    $region14: #{tpu_custom_call.1} parent=1 // pred_check
      _
    $region15: #{tpu_custom_call.1} parent=1 // pred_check_branch
      %28 = sbr.rel (0) target = $region17
    $region16: #{tpu_custom_call.1} parent=1 // pred_region
      _
    $region17: #{tpu_custom_call.1} parent=1 // pred_fallthru
      _
    // Predicated region
    $region18: #{tpu_custom_call.1} parent=1 // pred_check
      _
    $region19: #{tpu_custom_call.1} parent=1 // pred_check_branch
      %30 = sbr.rel (0) target = $region21
    $region20: #{tpu_custom_call.1} parent=1 // pred_region
      _
    $region21: #{tpu_custom_call.1} parent=1 // pred_fallthru
      _
    // Predicated region
    $region22: #{tpu_custom_call.1} parent=1 // pred_check
      _
    $region23: #{tpu_custom_call.1} parent=1 // pred_check_branch
      %32 = sbr.rel (0) target = $region25
    $region24: #{tpu_custom_call.1} parent=1 // pred_region
      _
    $region25: #{tpu_custom_call.1} parent=1 // pred_fallthru
      _
    // Predicated region
    $region26: #{tpu_custom_call.1} parent=1 // pred_check
      _
    $region27: #{tpu_custom_call.1} parent=1 // pred_check_branch
      %34 = sbr.rel (0) target = $region29
    $region28: #{tpu_custom_call.1} parent=1 // pred_region
      _
    $region29: #{tpu_custom_call.1} parent=1 // pred_fallthru
      _
    // Predicated region
    $region30: #{tpu_custom_call.1} parent=1 // pred_check
      _
    $region31: #{tpu_custom_call.1} parent=1 // pred_check_branch
      %36 = sbr.rel (0) target = $region33
    $region32: #{tpu_custom_call.1} parent=1 // pred_region
      _
    $region33: #{tpu_custom_call.1} parent=1 // pred_fallthru
      _
    // Predicated region
    $region34: #{tpu_custom_call.1} parent=1 // pred_check
      _
    $region35: #{tpu_custom_call.1} parent=1 // pred_check_branch
      %38 = sbr.rel (0) target = $region37
    $region36: #{tpu_custom_call.1} parent=1 // pred_region
      _
    $region37: #{tpu_custom_call.1} parent=1 // pred_fallthru
      _
    // Predicated region
    $region38: #{tpu_custom_call.1} parent=1 // pred_check
      _
    $region39: #{tpu_custom_call.1} parent=1 // pred_check_branch
      %40 = sbr.rel (0) target = $region41
    $region40: #{tpu_custom_call.1} parent=1 // pred_region
      _
    $region41: #{tpu_custom_call.1} parent=1 // pred_fallthru
      _
    // Predicated region
    $region42: #{tpu_custom_call.1} parent=1 // pred_check
      _
    $region43: #{tpu_custom_call.1} parent=1 // pred_check_branch
      %42 = sbr.rel (0) target = $region45
    $region44: #{tpu_custom_call.1} parent=1 // pred_region
      _
    $region45: #{tpu_custom_call.1} parent=1 // pred_fallthru
      _
    // Predicated region
    $region46: #{tpu_custom_call.1} parent=1 // pred_check
      _
    $region47: #{tpu_custom_call.1} parent=1 // pred_check_branch
      %44 = sbr.rel (0) target = $region49
    $region48: #{tpu_custom_call.1} parent=1 // pred_region
      _
    $region49: #{tpu_custom_call.1} parent=1 // pred_fallthru
      _
    // Predicated region
    $region50: #{tpu_custom_call.1} parent=1 // pred_check
      _
    $region51: #{tpu_custom_call.1} parent=1 // pred_check_branch
      %46 = sbr.rel (0) target = $region53
    $region52: #{tpu_custom_call.1} parent=1 // pred_region
      _
    $region53: #{tpu_custom_call.1} parent=1 // pred_fallthru
      _
    %v48 = vld [vmem:[%s0] sm:$0xff]
    %v49 = vld [vmem:[%s0 + $0x8] sm:$0xff]
    %v50 = vld [vmem:[%s0 + $0x10] sm:$0x3]
    %v51 = vpack.c.bf16 %v49, %v48
    %v52 = vpack.c.bf16 %v50, %v50
    %v53 = vld [vmem:[%s1] sm:$0xf]
    %v54 = vld [vmem:[%s1 + $0x4] sm:$0xf]
    %v55 = vld [vmem:[%s1 + $0x8] sm:$0xf]
    %v56 = vld [vmem:[%s1 + $0xc] sm:$0xf]
    %v57 = vld [vmem:[%s1 + $0x10] sm:$0xf]
    %v58 = vld [vmem:[%s1 + $0x14] sm:$0xf]
    %v59 = vld [vmem:[%s1 + $0x18] sm:$0xf]
    %v60 = vld [vmem:[%s1 + $0x1c] sm:$0xf]
    %v61 = vld [vmem:[%s2] sm:$0xff]
    %v62 = vld [vmem:[%s2 + $0x8] sm:$0xff]
    %v63 = vld [vmem:[%s2 + $0x10] sm:$0xff]
    %v64 = vld [vmem:[%s2 + $0x18] sm:$0xff]
    %v65 = vld [vmem:[%s2 + $0x20] sm:$0xff]
    %v66 = vld [vmem:[%s2 + $0x28] sm:$0xff]
    %v67 = vld [vmem:[%s2 + $0x30] sm:$0xff]
    %v68 = vld [vmem:[%s2 + $0x38] sm:$0xff]
    %70 = vset.pattern.permute.xlu0 0
    %71 = vperm.xlu0 %70, %v61
    %v72 = vpop.permute.xlu0 %71
    %75 = vset.pattern.permute.xlu0 0
    %76 = vperm.xlu0 %75, %v62
    %v77 = vpop.permute.xlu0 %76
    %80 = vset.pattern.permute.xlu0 0
    %81 = vperm.xlu0 %80, %v63
    %v82 = vpop.permute.xlu0 %81
    %85 = vset.pattern.permute.xlu0 0
    %86 = vperm.xlu0 %85, %v64
    %v87 = vpop.permute.xlu0 %86
    %90 = vset.pattern.permute.xlu0 0
    %91 = vperm.xlu0 %90, %v65
    %v92 = vpop.permute.xlu0 %91
    %95 = vset.pattern.permute.xlu0 0
    %96 = vperm.xlu0 %95, %v66
    %v97 = vpop.permute.xlu0 %96
    %100 = vset.pattern.permute.xlu0 0
    %101 = vperm.xlu0 %100, %v67
    %v102 = vpop.permute.xlu0 %101
    %105 = vset.pattern.permute.xlu0 0
    %106 = vperm.xlu0 %105, %v68
    %v107 = vpop.permute.xlu0 %106
    %v117 = vunpack.c.l.b16 %v53
    %v118 = vunpack.c.l.b16 %v54
    %v119 = vunpack.c.l.b16 %v55
    %v120 = vunpack.c.l.b16 %v56
    %v121 = vunpack.c.l.b16 %v57
    %v122 = vunpack.c.l.b16 %v58
    %v123 = vunpack.c.l.b16 %v59
    %v124 = vunpack.c.l.b16 %v60
    %v125 = vpack.c.b16 %v118, %v117
    %v126 = vpack.c.b16 %v120, %v119
    %v127 = vpack.c.b16 %v122, %v121
    %v128 = vpack.c.b16 %v124, %v123
    %vm129 = vcmask 146432
    %v131 = vsel %vm129, %v125, 0
    %v134 = vsel %vm129, %v126, 0
    %v137 = vsel %vm129, %v127, 0
    %v140 = vsel %vm129, %v128, 0
    %vm142 = vcmask 1040384
    %v144 = vsel %vm142, %v52, 0
    %146 = vmatprep.subr.bf16.mxu0 0
    %147 = vmatpush1.bf16.msra.mxu0 0
    %148 = vmatprep.subr.bf16.mxu0 0
    %149 = vmatpush1.bf16.msra.mxu0 0
    %150 = vmatprep.subr.bf16.mxu0 0
    %151 = vmatpush1.bf16.msra.mxu0 0
    %152 = vmatprep.subr.bf16.mxu0 0
    %153 = vmatpush1.bf16.msra.mxu0 0
    %154 = vmatprep.subr.bf16.mxu0 0
    %155 = vmatpush1.bf16.msra.mxu0 0
    %156 = vmatprep.subr.bf16.mxu0 0
    %157 = vmatpush1.bf16.msra.mxu0 0
    %158 = vmatprep.subr.bf16.mxu0 0
    %159 = vmatpush1.bf16.msra.mxu0 %v144
    %160 = vmatprep.subr.bf16.mxu0 0
    %161 = vmatpush1.bf16.msra.mxu0 %v51
    %162 = vmatprep.subr.bf16.mxu0 0
    %163 = vmatpush2.bf16.msra.mxu0 0
    %164 = vmatprep.subr.bf16.mxu0 0
    %165 = vmatpush2.bf16.msra.mxu0 0
    %166 = vmatprep.subr.bf16.mxu0 0
    %167 = vmatpush2.bf16.msra.mxu0 0
    %168 = vmatprep.subr.bf16.mxu0 0
    %169 = vmatpush2.bf16.msra.mxu0 0
    %170 = vmatprep.subr.bf16.mxu0 0
    %171 = vmatpush2.bf16.msra.mxu0 0
    %172 = vmatprep.subr.bf16.mxu0 0
    %173 = vmatpush2.bf16.msra.mxu0 0
    %174 = vmatprep.subr.bf16.mxu0 0
    %175 = vmatpush2.bf16.msra.mxu0 0
    %176 = vmatprep.subr.bf16.mxu0 0
    %177 = vmatpush2.bf16.msra.mxu0 0
    %178 = vmatprep.mubr.bf16.mxu0 0
    %179 = vmatmul.mubr.bf16.gmra.mxu0 %v131
    %v180 = vpop.f32.mrf.mxu0
    %v181 = vadd.f32 %v72, %v180
    %v182 = vpop.f32.mrf.mxu0
    %v183 = vpop.f32.mrf.mxu0
    %v184 = vadd.f32 %v77, %v183
    %v185 = vpop.f32.mrf.mxu0
    %186 = vmatprep.mubr.bf16.mxu0 0
    %187 = vmatmul.mubr.bf16.gmra.mxu0 %v134
    %v188 = vpop.f32.mrf.mxu0
    %v189 = vadd.f32 %v82, %v188
    %v190 = vpop.f32.mrf.mxu0
    %v191 = vpop.f32.mrf.mxu0
    %v192 = vadd.f32 %v87, %v191
    %v193 = vpop.f32.mrf.mxu0
    %194 = vmatprep.mubr.bf16.mxu0 0
    %195 = vmatmul.mubr.bf16.gmra.mxu0 %v137
    %v196 = vpop.f32.mrf.mxu0
    %v197 = vadd.f32 %v92, %v196
    %v198 = vpop.f32.mrf.mxu0
    %v199 = vpop.f32.mrf.mxu0
    %v200 = vadd.f32 %v97, %v199
    %v201 = vpop.f32.mrf.mxu0
    %202 = vmatprep.mubr.bf16.mxu0 0
    %203 = vmatmul.mubr.bf16.gmra.mxu0 %v140
    %v204 = vpop.f32.mrf.mxu0
    %v205 = vadd.f32 %v102, %v204
    %v206 = vpop.f32.mrf.mxu0
    %v207 = vpop.f32.mrf.mxu0
    %v208 = vadd.f32 %v107, %v207
    %v209 = vpop.f32.mrf.mxu0
    %210 = vdwg.mxu0
    %v211 = vmax.f32 %v181, 0.0
    %v212 = vmax.f32 %v184, 0.0
    %v213 = vmax.f32 %v189, 0.0
    %v214 = vmax.f32 %v192, 0.0
    %v215 = vmax.f32 %v197, 0.0
    %v216 = vmax.f32 %v200, 0.0
    %v217 = vmax.f32 %v205, 0.0
    %v218 = vmax.f32 %v208, 0.0
    %v219 = vpack.c.bf16 %v212, %v211
    %v220 = vpack.c.bf16 %v214, %v213
    %v221 = vpack.c.bf16 %v216, %v215
    %v222 = vpack.c.bf16 %v218, %v217
    %v223 = vld [vmem:[%s3] sm:$0xf]
    %v224 = vld [vmem:[%s3 + $0x4] sm:$0xf]
    %v225 = vld [vmem:[%s3 + $0x8] sm:$0xf]
    %v226 = vld [vmem:[%s3 + $0xc] sm:$0xf]
    %v227 = vld [vmem:[%s3 + $0x10] sm:$0xf]
    %v228 = vld [vmem:[%s3 + $0x14] sm:$0xf]
    %v229 = vld [vmem:[%s3 + $0x18] sm:$0xf]
    %v230 = vld [vmem:[%s3 + $0x1c] sm:$0xf]
    %v231 = vld [vmem:[%s3 + $0x20] sm:$0xf]
    %v232 = vld [vmem:[%s3 + $0x24] sm:$0xf]
    %v233 = vld [vmem:[%s3 + $0x28] sm:$0xf]
    %v234 = vld [vmem:[%s3 + $0x2c] sm:$0xf]
    %v235 = vld [vmem:[%s3 + $0x30] sm:$0xf]
    %v236 = vld [vmem:[%s3 + $0x34] sm:$0xf]
    %v237 = vld [vmem:[%s3 + $0x38] sm:$0xf]
    %v238 = vld [vmem:[%s3 + $0x3c] sm:$0xf]
    %v239 = vld [vmem:[%s4] sm:$0xff]
    %v240 = vld [vmem:[%s4 + $0x8] sm:$0xff]
    %v241 = vld [vmem:[%s4 + $0x10] sm:$0xff]
    %v242 = vld [vmem:[%s4 + $0x18] sm:$0xff]
    %v243 = vld [vmem:[%s4 + $0x20] sm:$0xff]
    %v244 = vld [vmem:[%s4 + $0x28] sm:$0xff]
    %v245 = vld [vmem:[%s4 + $0x30] sm:$0xff]
    %v246 = vld [vmem:[%s4 + $0x38] sm:$0xff]
    %v247 = vld [vmem:[%s4 + $0x40] sm:$0xff]
    %v248 = vld [vmem:[%s4 + $0x48] sm:$0xff]
    %v249 = vld [vmem:[%s4 + $0x50] sm:$0xff]
    %v250 = vld [vmem:[%s4 + $0x58] sm:$0xff]
    %v251 = vld [vmem:[%s4 + $0x60] sm:$0xff]
    %v252 = vld [vmem:[%s4 + $0x68] sm:$0xff]
    %v253 = vld [vmem:[%s4 + $0x70] sm:$0xff]
    %v254 = vld [vmem:[%s4 + $0x78] sm:$0xff]
    %256 = vset.pattern.permute.xlu0 0
    %257 = vperm.xlu0 %256, %v239
    %v258 = vpop.permute.xlu0 %257
    %261 = vset.pattern.permute.xlu0 0
    %262 = vperm.xlu0 %261, %v240
    %v263 = vpop.permute.xlu0 %262
    %266 = vset.pattern.permute.xlu0 0
    %267 = vperm.xlu0 %266, %v241
    %v268 = vpop.permute.xlu0 %267
    %271 = vset.pattern.permute.xlu0 0
    %272 = vperm.xlu0 %271, %v242
    %v273 = vpop.permute.xlu0 %272
    %276 = vset.pattern.permute.xlu0 0
    %277 = vperm.xlu0 %276, %v243
    %v278 = vpop.permute.xlu0 %277
    %281 = vset.pattern.permute.xlu0 0
    %282 = vperm.xlu0 %281, %v244
    %v283 = vpop.permute.xlu0 %282
    %286 = vset.pattern.permute.xlu0 0
    %287 = vperm.xlu0 %286, %v245
    %v288 = vpop.permute.xlu0 %287
    %291 = vset.pattern.permute.xlu0 0
    %292 = vperm.xlu0 %291, %v246
    %v293 = vpop.permute.xlu0 %292
    %296 = vset.pattern.permute.xlu0 0
    %297 = vperm.xlu0 %296, %v247
    %v298 = vpop.permute.xlu0 %297
    %301 = vset.pattern.permute.xlu0 0
    %302 = vperm.xlu0 %301, %v248
    %v303 = vpop.permute.xlu0 %302
    %306 = vset.pattern.permute.xlu0 0
    %307 = vperm.xlu0 %306, %v249
    %v308 = vpop.permute.xlu0 %307
    %311 = vset.pattern.permute.xlu0 0
    %312 = vperm.xlu0 %311, %v250
    %v313 = vpop.permute.xlu0 %312
    %316 = vset.pattern.permute.xlu0 0
    %317 = vperm.xlu0 %316, %v251
    %v318 = vpop.permute.xlu0 %317
    %321 = vset.pattern.permute.xlu0 0
    %322 = vperm.xlu0 %321, %v252
    %v323 = vpop.permute.xlu0 %322
    %326 = vset.pattern.permute.xlu0 0
    %327 = vperm.xlu0 %326, %v253
    %v328 = vpop.permute.xlu0 %327
    %331 = vset.pattern.permute.xlu0 0
    %332 = vperm.xlu0 %331, %v254
    %v333 = vpop.permute.xlu0 %332
    %v351 = vunpack.c.l.b16 %v223
    %v352 = vunpack.c.l.b16 %v224
    %v353 = vunpack.c.l.b16 %v225
    %v354 = vunpack.c.l.b16 %v226
    %v355 = vunpack.c.l.b16 %v227
    %v356 = vunpack.c.l.b16 %v228
    %v357 = vunpack.c.l.b16 %v229
    %v358 = vunpack.c.l.b16 %v230
    %v359 = vunpack.c.l.b16 %v231
    %v360 = vunpack.c.l.b16 %v232
    %v361 = vunpack.c.l.b16 %v233
    %v362 = vunpack.c.l.b16 %v234
    %v363 = vunpack.c.l.b16 %v235
    %v364 = vunpack.c.l.b16 %v236
    %v365 = vunpack.c.l.b16 %v237
    %v366 = vunpack.c.l.b16 %v238
    %v367 = vpack.c.b16 %v352, %v351
    %v368 = vpack.c.b16 %v354, %v353
    %v369 = vpack.c.b16 %v356, %v355
    %v370 = vpack.c.b16 %v358, %v357
    %v371 = vpack.c.b16 %v360, %v359
    %v372 = vpack.c.b16 %v362, %v361
    %v373 = vpack.c.b16 %v364, %v363
    %v374 = vpack.c.b16 %v366, %v365
    %vm375 = vcmask 523264
    %v377 = vsel %vm375, %v367, 0
    %v380 = vsel %vm375, %v368, 0
    %v383 = vsel %vm375, %v369, 0
    %v386 = vsel %vm375, %v370, 0
    %v389 = vsel %vm375, %v371, 0
    %v392 = vsel %vm375, %v372, 0
    %v395 = vsel %vm375, %v373, 0
    %v398 = vsel %vm375, %v374, 0
    %400 = vmatprep.subr.bf16.mxu0 0
    %401 = vmatpush1.bf16.msra.mxu0 0
    %402 = vmatprep.subr.bf16.mxu0 0
    %403 = vmatpush1.bf16.msra.mxu0 0
    %404 = vmatprep.subr.bf16.mxu0 0
    %405 = vmatpush1.bf16.msra.mxu0 0
    %406 = vmatprep.subr.bf16.mxu0 0
    %407 = vmatpush1.bf16.msra.mxu0 0
    %408 = vmatprep.subr.bf16.mxu0 0
    %409 = vmatpush1.bf16.msra.mxu0 %v222
    %410 = vmatprep.subr.bf16.mxu0 0
    %411 = vmatpush1.bf16.msra.mxu0 %v221
    %412 = vmatprep.subr.bf16.mxu0 0
    %413 = vmatpush1.bf16.msra.mxu0 %v220
    %414 = vmatprep.subr.bf16.mxu0 0
    %415 = vmatpush1.bf16.msra.mxu0 %v219
    %416 = vmatprep.subr.bf16.mxu0 0
    %417 = vmatpush2.bf16.msra.mxu0 0
    %418 = vmatprep.subr.bf16.mxu0 0
    %419 = vmatpush2.bf16.msra.mxu0 0
    %420 = vmatprep.subr.bf16.mxu0 0
    %421 = vmatpush2.bf16.msra.mxu0 0
    %422 = vmatprep.subr.bf16.mxu0 0
    %423 = vmatpush2.bf16.msra.mxu0 0
    %424 = vmatprep.subr.bf16.mxu0 0
    %425 = vmatpush2.bf16.msra.mxu0 0
    %426 = vmatprep.subr.bf16.mxu0 0
    %427 = vmatpush2.bf16.msra.mxu0 0
    %428 = vmatprep.subr.bf16.mxu0 0
    %429 = vmatpush2.bf16.msra.mxu0 0
    %430 = vmatprep.subr.bf16.mxu0 0
    %431 = vmatpush2.bf16.msra.mxu0 0
    %432 = vmatprep.mubr.bf16.mxu0 0
    %433 = vmatmul.mubr.bf16.gmra.mxu0 %v377
    %v434 = vpop.f32.mrf.mxu0
    %v435 = vadd.f32 %v258, %v434
    %v436 = vpop.f32.mrf.mxu0
    %v437 = vpop.f32.mrf.mxu0
    %v438 = vadd.f32 %v263, %v437
    %v439 = vpop.f32.mrf.mxu0
    %440 = vmatprep.mubr.bf16.mxu0 0
    %441 = vmatmul.mubr.bf16.gmra.mxu0 %v380
    %v442 = vpop.f32.mrf.mxu0
    %v443 = vadd.f32 %v268, %v442
    %v444 = vpop.f32.mrf.mxu0
    %v445 = vpop.f32.mrf.mxu0
    %v446 = vadd.f32 %v273, %v445
    %v447 = vpop.f32.mrf.mxu0
    %448 = vmatprep.mubr.bf16.mxu0 0
    %449 = vmatmul.mubr.bf16.gmra.mxu0 %v383
    %v450 = vpop.f32.mrf.mxu0
    %v451 = vadd.f32 %v278, %v450
    %v452 = vpop.f32.mrf.mxu0
    %v453 = vpop.f32.mrf.mxu0
    %v454 = vadd.f32 %v283, %v453
    %v455 = vpop.f32.mrf.mxu0
    %456 = vmatprep.mubr.bf16.mxu0 0
    %457 = vmatmul.mubr.bf16.gmra.mxu0 %v386
    %v458 = vpop.f32.mrf.mxu0
    %v459 = vadd.f32 %v288, %v458
    %v460 = vpop.f32.mrf.mxu0
    %v461 = vpop.f32.mrf.mxu0
    %v462 = vadd.f32 %v293, %v461
    %v463 = vpop.f32.mrf.mxu0
    %464 = vmatprep.mubr.bf16.mxu0 0
    %465 = vmatmul.mubr.bf16.gmra.mxu0 %v389
    %v466 = vpop.f32.mrf.mxu0
    %v467 = vadd.f32 %v298, %v466
    %v468 = vpop.f32.mrf.mxu0
    %v469 = vpop.f32.mrf.mxu0
    %v470 = vadd.f32 %v303, %v469
    %v471 = vpop.f32.mrf.mxu0
    %472 = vmatprep.mubr.bf16.mxu0 0
    %473 = vmatmul.mubr.bf16.gmra.mxu0 %v392
    %v474 = vpop.f32.mrf.mxu0
    %v475 = vadd.f32 %v308, %v474
    %v476 = vpop.f32.mrf.mxu0
    %v477 = vpop.f32.mrf.mxu0
    %v478 = vadd.f32 %v313, %v477
    %v479 = vpop.f32.mrf.mxu0
    %480 = vmatprep.mubr.bf16.mxu0 0
    %481 = vmatmul.mubr.bf16.gmra.mxu0 %v395
    %v482 = vpop.f32.mrf.mxu0
    %v483 = vadd.f32 %v318, %v482
    %v484 = vpop.f32.mrf.mxu0
    %v485 = vpop.f32.mrf.mxu0
    %v486 = vadd.f32 %v323, %v485
    %v487 = vpop.f32.mrf.mxu0
    %488 = vmatprep.mubr.bf16.mxu0 0
    %489 = vmatmul.mubr.bf16.gmra.mxu0 %v398
    %v490 = vpop.f32.mrf.mxu0
    %v491 = vadd.f32 %v328, %v490
    %v492 = vpop.f32.mrf.mxu0
    %v493 = vpop.f32.mrf.mxu0
    %v494 = vadd.f32 %v333, %v493
    %v495 = vpop.f32.mrf.mxu0
    %496 = vdwg.mxu0
    %v497 = vmax.f32 %v435, 0.0
    %v498 = vmax.f32 %v438, 0.0
    %v499 = vmax.f32 %v443, 0.0
    %v500 = vmax.f32 %v446, 0.0
    %v501 = vmax.f32 %v451, 0.0
    %v502 = vmax.f32 %v454, 0.0
    %v503 = vmax.f32 %v459, 0.0
    %v504 = vmax.f32 %v462, 0.0
    %v505 = vmax.f32 %v467, 0.0
    %v506 = vmax.f32 %v470, 0.0
    %v507 = vmax.f32 %v475, 0.0
    %v508 = vmax.f32 %v478, 0.0
    %v509 = vmax.f32 %v483, 0.0
    %v510 = vmax.f32 %v486, 0.0
    %v511 = vmax.f32 %v491, 0.0
    %v512 = vmax.f32 %v494, 0.0
    %v513 = vpack.c.bf16 %v498, %v497
    %v514 = vpack.c.bf16 %v500, %v499
    %v515 = vpack.c.bf16 %v502, %v501
    %v516 = vpack.c.bf16 %v504, %v503
    %v517 = vpack.c.bf16 %v506, %v505
    %v518 = vpack.c.bf16 %v508, %v507
    %v519 = vpack.c.bf16 %v510, %v509
    %v520 = vpack.c.bf16 %v512, %v511
    %v521 = vld [vmem:[%s5] sm:$0xf]
    %v522 = vld [vmem:[%s5 + $0x4] sm:$0xf]
    %v523 = vld [vmem:[%s5 + $0x8] sm:$0xf]
    %v524 = vld [vmem:[%s5 + $0xc] sm:$0xf]
    %v525 = vld [vmem:[%s5 + $0x10] sm:$0xf]
    %v526 = vld [vmem:[%s5 + $0x14] sm:$0xf]
    %v527 = vld [vmem:[%s5 + $0x18] sm:$0xf]
    %v528 = vld [vmem:[%s5 + $0x1c] sm:$0xf]
    %v529 = vld [vmem:[%s5 + $0x20] sm:$0xf]
    %v530 = vld [vmem:[%s5 + $0x24] sm:$0xf]
    %v531 = vld [vmem:[%s5 + $0x28] sm:$0xf]
    %v532 = vld [vmem:[%s5 + $0x2c] sm:$0xf]
    %v533 = vld [vmem:[%s5 + $0x30] sm:$0xf]
    %v534 = vld [vmem:[%s5 + $0x34] sm:$0xf]
    %v535 = vld [vmem:[%s5 + $0x38] sm:$0xf]
    %v536 = vld [vmem:[%s5 + $0x3c] sm:$0xf]
    %v537 = vld [vmem:[%s6] sm:$0xff]
    %v538 = vld [vmem:[%s6 + $0x8] sm:$0xff]
    %v539 = vld [vmem:[%s6 + $0x10] sm:$0xff]
    %v540 = vld [vmem:[%s6 + $0x18] sm:$0xff]
    %v541 = vld [vmem:[%s6 + $0x20] sm:$0xff]
    %v542 = vld [vmem:[%s6 + $0x28] sm:$0xff]
    %v543 = vld [vmem:[%s6 + $0x30] sm:$0xff]
    %v544 = vld [vmem:[%s6 + $0x38] sm:$0xff]
    %v545 = vld [vmem:[%s6 + $0x40] sm:$0xff]
    %v546 = vld [vmem:[%s6 + $0x48] sm:$0xff]
    %v547 = vld [vmem:[%s6 + $0x50] sm:$0xff]
    %v548 = vld [vmem:[%s6 + $0x58] sm:$0xff]
    %v549 = vld [vmem:[%s6 + $0x60] sm:$0xff]
    %v550 = vld [vmem:[%s6 + $0x68] sm:$0xff]
    %v551 = vld [vmem:[%s6 + $0x70] sm:$0xff]
    %v552 = vld [vmem:[%s6 + $0x78] sm:$0xff]
    %554 = vset.pattern.permute.xlu0 0
    %555 = vperm.xlu0 %554, %v537
    %v556 = vpop.permute.xlu0 %555
    %559 = vset.pattern.permute.xlu0 0
    %560 = vperm.xlu0 %559, %v538
    %v561 = vpop.permute.xlu0 %560
    %564 = vset.pattern.permute.xlu0 0
    %565 = vperm.xlu0 %564, %v539
    %v566 = vpop.permute.xlu0 %565
    %569 = vset.pattern.permute.xlu0 0
    %570 = vperm.xlu0 %569, %v540
    %v571 = vpop.permute.xlu0 %570
    %574 = vset.pattern.permute.xlu0 0
    %575 = vperm.xlu0 %574, %v541
    %v576 = vpop.permute.xlu0 %575
    %579 = vset.pattern.permute.xlu0 0
    %580 = vperm.xlu0 %579, %v542
    %v581 = vpop.permute.xlu0 %580
    %584 = vset.pattern.permute.xlu0 0
    %585 = vperm.xlu0 %584, %v543
    %v586 = vpop.permute.xlu0 %585
    %589 = vset.pattern.permute.xlu0 0
    %590 = vperm.xlu0 %589, %v544
    %v591 = vpop.permute.xlu0 %590
    %594 = vset.pattern.permute.xlu0 0
    %595 = vperm.xlu0 %594, %v545
    %v596 = vpop.permute.xlu0 %595
    %599 = vset.pattern.permute.xlu0 0
    %600 = vperm.xlu0 %599, %v546
    %v601 = vpop.permute.xlu0 %600
    %604 = vset.pattern.permute.xlu0 0
    %605 = vperm.xlu0 %604, %v547
    %v606 = vpop.permute.xlu0 %605
    %609 = vset.pattern.permute.xlu0 0
    %610 = vperm.xlu0 %609, %v548
    %v611 = vpop.permute.xlu0 %610
    %614 = vset.pattern.permute.xlu0 0
    %615 = vperm.xlu0 %614, %v549
    %v616 = vpop.permute.xlu0 %615
    %619 = vset.pattern.permute.xlu0 0
    %620 = vperm.xlu0 %619, %v550
    %v621 = vpop.permute.xlu0 %620
    %624 = vset.pattern.permute.xlu0 0
    %625 = vperm.xlu0 %624, %v551
    %v626 = vpop.permute.xlu0 %625
    %629 = vset.pattern.permute.xlu0 0
    %630 = vperm.xlu0 %629, %v552
    %v631 = vpop.permute.xlu0 %630
    %v649 = vunpack.c.l.b16 %v521
    %v650 = vunpack.c.l.b16 %v522
    %v651 = vunpack.c.l.b16 %v523
    %v652 = vunpack.c.l.b16 %v524
    %v653 = vunpack.c.l.b16 %v525
    %v654 = vunpack.c.l.b16 %v526
    %v655 = vunpack.c.l.b16 %v527
    %v656 = vunpack.c.l.b16 %v528
    %v657 = vunpack.c.l.b16 %v529
    %v658 = vunpack.c.l.b16 %v530
    %v659 = vunpack.c.l.b16 %v531
    %v660 = vunpack.c.l.b16 %v532
    %v661 = vunpack.c.l.b16 %v533
    %v662 = vunpack.c.l.b16 %v534
    %v663 = vunpack.c.l.b16 %v535
    %v664 = vunpack.c.l.b16 %v536
    %v665 = vpack.c.b16 %v650, %v649
    %v666 = vpack.c.b16 %v652, %v651
    %v667 = vpack.c.b16 %v654, %v653
    %v668 = vpack.c.b16 %v656, %v655
    %v669 = vpack.c.b16 %v658, %v657
    %v670 = vpack.c.b16 %v660, %v659
    %v671 = vpack.c.b16 %v662, %v661
    %v672 = vpack.c.b16 %v664, %v663
    %681 = vmatprep.subr.bf16.mxu0 0
    %682 = vmatpush1.bf16.msra.mxu0 %v520
    %683 = vmatprep.subr.bf16.mxu0 0
    %684 = vmatpush1.bf16.msra.mxu0 %v519
    %685 = vmatprep.subr.bf16.mxu0 0
    %686 = vmatpush1.bf16.msra.mxu0 %v518
    %687 = vmatprep.subr.bf16.mxu0 0
    %688 = vmatpush1.bf16.msra.mxu0 %v517
    %689 = vmatprep.subr.bf16.mxu0 0
    %690 = vmatpush1.bf16.msra.mxu0 %v516
    %691 = vmatprep.subr.bf16.mxu0 0
    %692 = vmatpush1.bf16.msra.mxu0 %v515
    %693 = vmatprep.subr.bf16.mxu0 0
    %694 = vmatpush1.bf16.msra.mxu0 %v514
    %695 = vmatprep.subr.bf16.mxu0 0
    %696 = vmatpush1.bf16.msra.mxu0 %v513
    %697 = vmatprep.subr.bf16.mxu0 0
    %698 = vmatpush2.bf16.msra.mxu0 0
    %699 = vmatprep.subr.bf16.mxu0 0
    %700 = vmatpush2.bf16.msra.mxu0 0
    %701 = vmatprep.subr.bf16.mxu0 0
    %702 = vmatpush2.bf16.msra.mxu0 0
    %703 = vmatprep.subr.bf16.mxu0 0
    %704 = vmatpush2.bf16.msra.mxu0 0
    %705 = vmatprep.subr.bf16.mxu0 0
    %706 = vmatpush2.bf16.msra.mxu0 0
    %707 = vmatprep.subr.bf16.mxu0 0
    %708 = vmatpush2.bf16.msra.mxu0 0
    %709 = vmatprep.subr.bf16.mxu0 0
    %710 = vmatpush2.bf16.msra.mxu0 0
    %711 = vmatprep.subr.bf16.mxu0 0
    %712 = vmatpush2.bf16.msra.mxu0 0
    %713 = vmatprep.mubr.bf16.mxu0 0
    %714 = vmatmul.mubr.bf16.gmra.mxu0 %v665
    %v715 = vpop.f32.mrf.mxu0
    %v716 = vadd.f32 %v556, %v715
    %v717 = vpop.f32.mrf.mxu0
    %v718 = vpop.f32.mrf.mxu0
    %v719 = vadd.f32 %v561, %v718
    %v720 = vpop.f32.mrf.mxu0
    %721 = vmatprep.mubr.bf16.mxu0 0
    %722 = vmatmul.mubr.bf16.gmra.mxu0 %v666
    %v723 = vpop.f32.mrf.mxu0
    %v724 = vadd.f32 %v566, %v723
    %v725 = vpop.f32.mrf.mxu0
    %v726 = vpop.f32.mrf.mxu0
    %v727 = vadd.f32 %v571, %v726
    %v728 = vpop.f32.mrf.mxu0
    %729 = vmatprep.mubr.bf16.mxu0 0
    %730 = vmatmul.mubr.bf16.gmra.mxu0 %v667
    %v731 = vpop.f32.mrf.mxu0
    %v732 = vadd.f32 %v576, %v731
    %v733 = vpop.f32.mrf.mxu0
    %v734 = vpop.f32.mrf.mxu0
    %v735 = vadd.f32 %v581, %v734
    %v736 = vpop.f32.mrf.mxu0
    %737 = vmatprep.mubr.bf16.mxu0 0
    %738 = vmatmul.mubr.bf16.gmra.mxu0 %v668
    %v739 = vpop.f32.mrf.mxu0
    %v740 = vadd.f32 %v586, %v739
    %v741 = vpop.f32.mrf.mxu0
    %v742 = vpop.f32.mrf.mxu0
    %v743 = vadd.f32 %v591, %v742
    %v744 = vpop.f32.mrf.mxu0
    %745 = vmatprep.mubr.bf16.mxu0 0
    %746 = vmatmul.mubr.bf16.gmra.mxu0 %v669
    %v747 = vpop.f32.mrf.mxu0
    %v748 = vadd.f32 %v596, %v747
    %v749 = vpop.f32.mrf.mxu0
    %v750 = vpop.f32.mrf.mxu0
    %v751 = vadd.f32 %v601, %v750
    %v752 = vpop.f32.mrf.mxu0
    %753 = vmatprep.mubr.bf16.mxu0 0
    %754 = vmatmul.mubr.bf16.gmra.mxu0 %v670
    %v755 = vpop.f32.mrf.mxu0
    %v756 = vadd.f32 %v606, %v755
    %v757 = vpop.f32.mrf.mxu0
    %v758 = vpop.f32.mrf.mxu0
    %v759 = vadd.f32 %v611, %v758
    %v760 = vpop.f32.mrf.mxu0
    %761 = vmatprep.mubr.bf16.mxu0 0
    %762 = vmatmul.mubr.bf16.gmra.mxu0 %v671
    %v763 = vpop.f32.mrf.mxu0
    %v764 = vadd.f32 %v616, %v763
    %v765 = vpop.f32.mrf.mxu0
    %v766 = vpop.f32.mrf.mxu0
    %v767 = vadd.f32 %v621, %v766
    %v768 = vpop.f32.mrf.mxu0
    %769 = vmatprep.mubr.bf16.mxu0 0
    %770 = vmatmul.mubr.bf16.gmra.mxu0 %v672
    %v771 = vpop.f32.mrf.mxu0
    %v772 = vadd.f32 %v626, %v771
    %v773 = vpop.f32.mrf.mxu0
    %v774 = vpop.f32.mrf.mxu0
    %v775 = vadd.f32 %v631, %v774
    %v776 = vpop.f32.mrf.mxu0
    %777 = vdwg.mxu0
    %v778 = vmax.f32 %v716, 0.0
    %v779 = vmax.f32 %v719, 0.0
    %v780 = vmax.f32 %v724, 0.0
    %v781 = vmax.f32 %v727, 0.0
    %v782 = vmax.f32 %v732, 0.0
    %v783 = vmax.f32 %v735, 0.0
    %v784 = vmax.f32 %v740, 0.0
    %v785 = vmax.f32 %v743, 0.0
    %v786 = vmax.f32 %v748, 0.0
    %v787 = vmax.f32 %v751, 0.0
    %v788 = vmax.f32 %v756, 0.0
    %v789 = vmax.f32 %v759, 0.0
    %v790 = vmax.f32 %v764, 0.0
    %v791 = vmax.f32 %v767, 0.0
    %v792 = vmax.f32 %v772, 0.0
    %v793 = vmax.f32 %v775, 0.0
    %v794 = vpack.c.bf16 %v779, %v778
    %v795 = vpack.c.bf16 %v781, %v780
    %v796 = vpack.c.bf16 %v783, %v782
    %v797 = vpack.c.bf16 %v785, %v784
    %v798 = vpack.c.bf16 %v787, %v786
    %v799 = vpack.c.bf16 %v789, %v788
    %v800 = vpack.c.bf16 %v791, %v790
    %v801 = vpack.c.bf16 %v793, %v792
    %v802 = vld [vmem:[%s7] sm:$0xf]
    %v803 = vld [vmem:[%s7 + $0x4] sm:$0xf]
    %v804 = vld [vmem:[%s7 + $0x8] sm:$0xf]
    %v805 = vld [vmem:[%s7 + $0xc] sm:$0xf]
    %v806 = vld [vmem:[%s7 + $0x10] sm:$0xf]
    %v807 = vld [vmem:[%s7 + $0x14] sm:$0xf]
    %v808 = vld [vmem:[%s7 + $0x18] sm:$0xf]
    %v809 = vld [vmem:[%s7 + $0x1c] sm:$0xf]
    %v810 = vld [vmem:[%s7 + $0x20] sm:$0xf]
    %v811 = vld [vmem:[%s7 + $0x24] sm:$0xf]
    %v812 = vld [vmem:[%s7 + $0x28] sm:$0xf]
    %v813 = vld [vmem:[%s7 + $0x2c] sm:$0xf]
    %v814 = vld [vmem:[%s7 + $0x30] sm:$0xf]
    %v815 = vld [vmem:[%s7 + $0x34] sm:$0xf]
    %v816 = vld [vmem:[%s7 + $0x38] sm:$0xf]
    %v817 = vld [vmem:[%s7 + $0x3c] sm:$0xf]
    %v818 = vld [vmem:[%s8] sm:$0xff]
    %v819 = vld [vmem:[%s8 + $0x8] sm:$0xff]
    %v820 = vld [vmem:[%s8 + $0x10] sm:$0xff]
    %v821 = vld [vmem:[%s8 + $0x18] sm:$0xff]
    %v822 = vld [vmem:[%s8 + $0x20] sm:$0xff]
    %v823 = vld [vmem:[%s8 + $0x28] sm:$0xff]
    %v824 = vld [vmem:[%s8 + $0x30] sm:$0xff]
    %v825 = vld [vmem:[%s8 + $0x38] sm:$0xff]
    %v826 = vld [vmem:[%s8 + $0x40] sm:$0xff]
    %v827 = vld [vmem:[%s8 + $0x48] sm:$0xff]
    %v828 = vld [vmem:[%s8 + $0x50] sm:$0xff]
    %v829 = vld [vmem:[%s8 + $0x58] sm:$0xff]
    %v830 = vld [vmem:[%s8 + $0x60] sm:$0xff]
    %v831 = vld [vmem:[%s8 + $0x68] sm:$0xff]
    %v832 = vld [vmem:[%s8 + $0x70] sm:$0xff]
    %v833 = vld [vmem:[%s8 + $0x78] sm:$0xff]
    %835 = vset.pattern.permute.xlu0 0
    %836 = vperm.xlu0 %835, %v818
    %v837 = vpop.permute.xlu0 %836
    %840 = vset.pattern.permute.xlu0 0
    %841 = vperm.xlu0 %840, %v819
    %v842 = vpop.permute.xlu0 %841
    %845 = vset.pattern.permute.xlu0 0
    %846 = vperm.xlu0 %845, %v820
    %v847 = vpop.permute.xlu0 %846
    %850 = vset.pattern.permute.xlu0 0
    %851 = vperm.xlu0 %850, %v821
    %v852 = vpop.permute.xlu0 %851
    %855 = vset.pattern.permute.xlu0 0
    %856 = vperm.xlu0 %855, %v822
    %v857 = vpop.permute.xlu0 %856
    %860 = vset.pattern.permute.xlu0 0
    %861 = vperm.xlu0 %860, %v823
    %v862 = vpop.permute.xlu0 %861
    %865 = vset.pattern.permute.xlu0 0
    %866 = vperm.xlu0 %865, %v824
    %v867 = vpop.permute.xlu0 %866
    %870 = vset.pattern.permute.xlu0 0
    %871 = vperm.xlu0 %870, %v825
    %v872 = vpop.permute.xlu0 %871
    %875 = vset.pattern.permute.xlu0 0
    %876 = vperm.xlu0 %875, %v826
    %v877 = vpop.permute.xlu0 %876
    %880 = vset.pattern.permute.xlu0 0
    %881 = vperm.xlu0 %880, %v827
    %v882 = vpop.permute.xlu0 %881
    %885 = vset.pattern.permute.xlu0 0
    %886 = vperm.xlu0 %885, %v828
    %v887 = vpop.permute.xlu0 %886
    %890 = vset.pattern.permute.xlu0 0
    %891 = vperm.xlu0 %890, %v829
    %v892 = vpop.permute.xlu0 %891
    %895 = vset.pattern.permute.xlu0 0
    %896 = vperm.xlu0 %895, %v830
    %v897 = vpop.permute.xlu0 %896
    %900 = vset.pattern.permute.xlu0 0
    %901 = vperm.xlu0 %900, %v831
    %v902 = vpop.permute.xlu0 %901
    %905 = vset.pattern.permute.xlu0 0
    %906 = vperm.xlu0 %905, %v832
    %v907 = vpop.permute.xlu0 %906
    %910 = vset.pattern.permute.xlu0 0
    %911 = vperm.xlu0 %910, %v833
    %v912 = vpop.permute.xlu0 %911
    %v930 = vunpack.c.l.b16 %v802
    %v931 = vunpack.c.l.b16 %v803
    %v932 = vunpack.c.l.b16 %v804
    %v933 = vunpack.c.l.b16 %v805
    %v934 = vunpack.c.l.b16 %v806
    %v935 = vunpack.c.l.b16 %v807
    %v936 = vunpack.c.l.b16 %v808
    %v937 = vunpack.c.l.b16 %v809
    %v938 = vunpack.c.l.b16 %v810
    %v939 = vunpack.c.l.b16 %v811
    %v940 = vunpack.c.l.b16 %v812
    %v941 = vunpack.c.l.b16 %v813
    %v942 = vunpack.c.l.b16 %v814
    %v943 = vunpack.c.l.b16 %v815
    %v944 = vunpack.c.l.b16 %v816
    %v945 = vunpack.c.l.b16 %v817
    %v946 = vpack.c.b16 %v931, %v930
    %v947 = vpack.c.b16 %v933, %v932
    %v948 = vpack.c.b16 %v935, %v934
    %v949 = vpack.c.b16 %v937, %v936
    %v950 = vpack.c.b16 %v939, %v938
    %v951 = vpack.c.b16 %v941, %v940
    %v952 = vpack.c.b16 %v943, %v942
    %v953 = vpack.c.b16 %v945, %v944
    %962 = vmatprep.subr.bf16.mxu0 0
    %963 = vmatpush1.bf16.msra.mxu0 %v801
    %964 = vmatprep.subr.bf16.mxu0 0
    %965 = vmatpush1.bf16.msra.mxu0 %v800
    %966 = vmatprep.subr.bf16.mxu0 0
    %967 = vmatpush1.bf16.msra.mxu0 %v799
    %968 = vmatprep.subr.bf16.mxu0 0
    %969 = vmatpush1.bf16.msra.mxu0 %v798
    %970 = vmatprep.subr.bf16.mxu0 0
    %971 = vmatpush1.bf16.msra.mxu0 %v797
    %972 = vmatprep.subr.bf16.mxu0 0
    %973 = vmatpush1.bf16.msra.mxu0 %v796
    %974 = vmatprep.subr.bf16.mxu0 0
    %975 = vmatpush1.bf16.msra.mxu0 %v795
    %976 = vmatprep.subr.bf16.mxu0 0
    %977 = vmatpush1.bf16.msra.mxu0 %v794
    %978 = vmatprep.subr.bf16.mxu0 0
    %979 = vmatpush2.bf16.msra.mxu0 0
    %980 = vmatprep.subr.bf16.mxu0 0
    %981 = vmatpush2.bf16.msra.mxu0 0
    %982 = vmatprep.subr.bf16.mxu0 0
    %983 = vmatpush2.bf16.msra.mxu0 0
    %984 = vmatprep.subr.bf16.mxu0 0
    %985 = vmatpush2.bf16.msra.mxu0 0
    %986 = vmatprep.subr.bf16.mxu0 0
    %987 = vmatpush2.bf16.msra.mxu0 0
    %988 = vmatprep.subr.bf16.mxu0 0
    %989 = vmatpush2.bf16.msra.mxu0 0
    %990 = vmatprep.subr.bf16.mxu0 0
    %991 = vmatpush2.bf16.msra.mxu0 0
    %992 = vmatprep.subr.bf16.mxu0 0
    %993 = vmatpush2.bf16.msra.mxu0 0
    %994 = vmatprep.mubr.bf16.mxu0 0
    %995 = vmatmul.mubr.bf16.gmra.mxu0 %v946
    %v996 = vpop.f32.mrf.mxu0
    %v997 = vadd.f32 %v837, %v996
    %v998 = vpop.f32.mrf.mxu0
    %v999 = vpop.f32.mrf.mxu0
    %v1000 = vadd.f32 %v842, %v999
    %v1001 = vpop.f32.mrf.mxu0
    %1002 = vmatprep.mubr.bf16.mxu0 0
    %1003 = vmatmul.mubr.bf16.gmra.mxu0 %v947
    %v1004 = vpop.f32.mrf.mxu0
    %v1005 = vadd.f32 %v847, %v1004
    %v1006 = vpop.f32.mrf.mxu0
    %v1007 = vpop.f32.mrf.mxu0
    %v1008 = vadd.f32 %v852, %v1007
    %v1009 = vpop.f32.mrf.mxu0
    %1010 = vmatprep.mubr.bf16.mxu0 0
    %1011 = vmatmul.mubr.bf16.gmra.mxu0 %v948
    %v1012 = vpop.f32.mrf.mxu0
    %v1013 = vadd.f32 %v857, %v1012
    %v1014 = vpop.f32.mrf.mxu0
    %v1015 = vpop.f32.mrf.mxu0
    %v1016 = vadd.f32 %v862, %v1015
    %v1017 = vpop.f32.mrf.mxu0
    %1018 = vmatprep.mubr.bf16.mxu0 0
    %1019 = vmatmul.mubr.bf16.gmra.mxu0 %v949
    %v1020 = vpop.f32.mrf.mxu0
    %v1021 = vadd.f32 %v867, %v1020
    %v1022 = vpop.f32.mrf.mxu0
    %v1023 = vpop.f32.mrf.mxu0
    %v1024 = vadd.f32 %v872, %v1023
    %v1025 = vpop.f32.mrf.mxu0
    %1026 = vmatprep.mubr.bf16.mxu0 0
    %1027 = vmatmul.mubr.bf16.gmra.mxu0 %v950
    %v1028 = vpop.f32.mrf.mxu0
    %v1029 = vadd.f32 %v877, %v1028
    %v1030 = vpop.f32.mrf.mxu0
    %v1031 = vpop.f32.mrf.mxu0
    %v1032 = vadd.f32 %v882, %v1031
    %v1033 = vpop.f32.mrf.mxu0
    %1034 = vmatprep.mubr.bf16.mxu0 0
    %1035 = vmatmul.mubr.bf16.gmra.mxu0 %v951
    %v1036 = vpop.f32.mrf.mxu0
    %v1037 = vadd.f32 %v887, %v1036
    %v1038 = vpop.f32.mrf.mxu0
    %v1039 = vpop.f32.mrf.mxu0
    %v1040 = vadd.f32 %v892, %v1039
    %v1041 = vpop.f32.mrf.mxu0
    %1042 = vmatprep.mubr.bf16.mxu0 0
    %1043 = vmatmul.mubr.bf16.gmra.mxu0 %v952
    %v1044 = vpop.f32.mrf.mxu0
    %v1045 = vadd.f32 %v897, %v1044
    %v1046 = vpop.f32.mrf.mxu0
    %v1047 = vpop.f32.mrf.mxu0
    %v1048 = vadd.f32 %v902, %v1047
    %v1049 = vpop.f32.mrf.mxu0
    %1050 = vmatprep.mubr.bf16.mxu0 0
    %1051 = vmatmul.mubr.bf16.gmra.mxu0 %v953
    %v1052 = vpop.f32.mrf.mxu0
    %v1053 = vadd.f32 %v907, %v1052
    %v1054 = vpop.f32.mrf.mxu0
    %v1055 = vpop.f32.mrf.mxu0
    %v1056 = vadd.f32 %v912, %v1055
    %v1057 = vpop.f32.mrf.mxu0
    %1058 = vdwg.mxu0
    %v1059 = vmax.f32 %v997, 0.0
    %v1060 = vmax.f32 %v1000, 0.0
    %v1061 = vmax.f32 %v1005, 0.0
    %v1062 = vmax.f32 %v1008, 0.0
    %v1063 = vmax.f32 %v1013, 0.0
    %v1064 = vmax.f32 %v1016, 0.0
    %v1065 = vmax.f32 %v1021, 0.0
    %v1066 = vmax.f32 %v1024, 0.0
    %v1067 = vmax.f32 %v1029, 0.0
    %v1068 = vmax.f32 %v1032, 0.0
    %v1069 = vmax.f32 %v1037, 0.0
    %v1070 = vmax.f32 %v1040, 0.0
    %v1071 = vmax.f32 %v1045, 0.0
    %v1072 = vmax.f32 %v1048, 0.0
    %v1073 = vmax.f32 %v1053, 0.0
    %v1074 = vmax.f32 %v1056, 0.0
    %v1075 = vpack.c.bf16 %v1060, %v1059
    %v1076 = vpack.c.bf16 %v1062, %v1061
    %v1077 = vpack.c.bf16 %v1064, %v1063
    %v1078 = vpack.c.bf16 %v1066, %v1065
    %v1079 = vpack.c.bf16 %v1068, %v1067
    %v1080 = vpack.c.bf16 %v1070, %v1069
    %v1081 = vpack.c.bf16 %v1072, %v1071
    %v1082 = vpack.c.bf16 %v1074, %v1073
    %v1083 = vld [vmem:[%s9] sm:$0xf]
    %v1084 = vld [vmem:[%s9 + $0x4] sm:$0xf]
    %v1085 = vld [vmem:[%s9 + $0x8] sm:$0xf]
    %v1086 = vld [vmem:[%s9 + $0xc] sm:$0xf]
    %v1087 = vld [vmem:[%s9 + $0x10] sm:$0xf]
    %v1088 = vld [vmem:[%s9 + $0x14] sm:$0xf]
    %v1089 = vld [vmem:[%s9 + $0x18] sm:$0xf]
    %v1090 = vld [vmem:[%s9 + $0x1c] sm:$0xf]
    %v1091 = vld [vmem:[%s10] sm:$0xff]
    %v1092 = vld [vmem:[%s10 + $0x8] sm:$0xff]
    %v1093 = vld [vmem:[%s10 + $0x10] sm:$0xff]
    %v1094 = vld [vmem:[%s10 + $0x18] sm:$0xff]
    %v1095 = vld [vmem:[%s10 + $0x20] sm:$0xff]
    %v1096 = vld [vmem:[%s10 + $0x28] sm:$0xff]
    %v1097 = vld [vmem:[%s10 + $0x30] sm:$0xff]
    %v1098 = vld [vmem:[%s10 + $0x38] sm:$0xff]
    %1100 = vset.pattern.permute.xlu0 0
    %1101 = vperm.xlu0 %1100, %v1091
    %v1102 = vpop.permute.xlu0 %1101
    %1105 = vset.pattern.permute.xlu0 0
    %1106 = vperm.xlu0 %1105, %v1092
    %v1107 = vpop.permute.xlu0 %1106
    %1110 = vset.pattern.permute.xlu0 0
    %1111 = vperm.xlu0 %1110, %v1093
    %v1112 = vpop.permute.xlu0 %1111
    %1115 = vset.pattern.permute.xlu0 0
    %1116 = vperm.xlu0 %1115, %v1094
    %v1117 = vpop.permute.xlu0 %1116
    %1120 = vset.pattern.permute.xlu0 0
    %1121 = vperm.xlu0 %1120, %v1095
    %v1122 = vpop.permute.xlu0 %1121
    %1125 = vset.pattern.permute.xlu0 0
    %1126 = vperm.xlu0 %1125, %v1096
    %v1127 = vpop.permute.xlu0 %1126
    %1130 = vset.pattern.permute.xlu0 0
    %1131 = vperm.xlu0 %1130, %v1097
    %v1132 = vpop.permute.xlu0 %1131
    %1135 = vset.pattern.permute.xlu0 0
    %1136 = vperm.xlu0 %1135, %v1098
    %v1137 = vpop.permute.xlu0 %1136
    %v1147 = vunpack.c.l.b16 %v1083
    %v1148 = vunpack.c.l.b16 %v1084
    %v1149 = vunpack.c.l.b16 %v1085
    %v1150 = vunpack.c.l.b16 %v1086
    %v1151 = vunpack.c.l.b16 %v1087
    %v1152 = vunpack.c.l.b16 %v1088
    %v1153 = vunpack.c.l.b16 %v1089
    %v1154 = vunpack.c.l.b16 %v1090
    %v1155 = vpack.c.b16 %v1148, %v1147
    %v1156 = vpack.c.b16 %v1150, %v1149
    %v1157 = vpack.c.b16 %v1152, %v1151
    %v1158 = vpack.c.b16 %v1154, %v1153
    %1163 = vmatprep.subr.bf16.mxu0 0
    %1164 = vmatpush1.bf16.msra.mxu0 %v1082
    %1165 = vmatprep.subr.bf16.mxu0 0
    %1166 = vmatpush1.bf16.msra.mxu0 %v1081
    %1167 = vmatprep.subr.bf16.mxu0 0
    %1168 = vmatpush1.bf16.msra.mxu0 %v1080
    %1169 = vmatprep.subr.bf16.mxu0 0
    %1170 = vmatpush1.bf16.msra.mxu0 %v1079
    %1171 = vmatprep.subr.bf16.mxu0 0
    %1172 = vmatpush1.bf16.msra.mxu0 %v1078
    %1173 = vmatprep.subr.bf16.mxu0 0
    %1174 = vmatpush1.bf16.msra.mxu0 %v1077
    %1175 = vmatprep.subr.bf16.mxu0 0
    %1176 = vmatpush1.bf16.msra.mxu0 %v1076
    %1177 = vmatprep.subr.bf16.mxu0 0
    %1178 = vmatpush1.bf16.msra.mxu0 %v1075
    %1179 = vmatprep.subr.bf16.mxu0 0
    %1180 = vmatpush2.bf16.msra.mxu0 0
    %1181 = vmatprep.subr.bf16.mxu0 0
    %1182 = vmatpush2.bf16.msra.mxu0 0
    %1183 = vmatprep.subr.bf16.mxu0 0
    %1184 = vmatpush2.bf16.msra.mxu0 0
    %1185 = vmatprep.subr.bf16.mxu0 0
    %1186 = vmatpush2.bf16.msra.mxu0 0
    %1187 = vmatprep.subr.bf16.mxu0 0
    %1188 = vmatpush2.bf16.msra.mxu0 0
    %1189 = vmatprep.subr.bf16.mxu0 0
    %1190 = vmatpush2.bf16.msra.mxu0 0
    %1191 = vmatprep.subr.bf16.mxu0 0
    %1192 = vmatpush2.bf16.msra.mxu0 0
    %1193 = vmatprep.subr.bf16.mxu0 0
    %1194 = vmatpush2.bf16.msra.mxu0 0
    %1195 = vmatprep.mubr.bf16.mxu0 0
    %1196 = vmatmul.mubr.bf16.gmra.mxu0 %v1155
    %v1197 = vpop.f32.mrf.mxu0
    %v1198 = vadd.f32 %v1102, %v1197
    %v1199 = vpop.f32.mrf.mxu0
    %v1200 = vpop.f32.mrf.mxu0
    %v1201 = vadd.f32 %v1107, %v1200
    %v1202 = vpop.f32.mrf.mxu0
    %1203 = vmatprep.mubr.bf16.mxu0 0
    %1204 = vmatmul.mubr.bf16.gmra.mxu0 %v1156
    %v1205 = vpop.f32.mrf.mxu0
    %v1206 = vadd.f32 %v1112, %v1205
    %v1207 = vpop.f32.mrf.mxu0
    %v1208 = vpop.f32.mrf.mxu0
    %v1209 = vadd.f32 %v1117, %v1208
    %v1210 = vpop.f32.mrf.mxu0
    %1211 = vmatprep.mubr.bf16.mxu0 0
    %1212 = vmatmul.mubr.bf16.gmra.mxu0 %v1157
    %v1213 = vpop.f32.mrf.mxu0
    %v1214 = vadd.f32 %v1122, %v1213
    %v1215 = vpop.f32.mrf.mxu0
    %v1216 = vpop.f32.mrf.mxu0
    %v1217 = vadd.f32 %v1127, %v1216
    %v1218 = vpop.f32.mrf.mxu0
    %1219 = vmatprep.mubr.bf16.mxu0 0
    %1220 = vmatmul.mubr.bf16.gmra.mxu0 %v1158
    %v1221 = vpop.f32.mrf.mxu0
    %v1222 = vadd.f32 %v1132, %v1221
    %v1223 = vpop.f32.mrf.mxu0
    %v1224 = vpop.f32.mrf.mxu0
    %v1225 = vadd.f32 %v1137, %v1224
    %v1226 = vpop.f32.mrf.mxu0
    %1227 = vdwg.mxu0
    %v1228 = vmax.f32 %v1198, 0.0
    %v1229 = vmax.f32 %v1201, 0.0
    %v1230 = vmax.f32 %v1206, 0.0
    %v1231 = vmax.f32 %v1209, 0.0
    %v1232 = vmax.f32 %v1214, 0.0
    %v1233 = vmax.f32 %v1217, 0.0
    %v1234 = vmax.f32 %v1222, 0.0
    %v1235 = vmax.f32 %v1225, 0.0
    %v1236 = vld [vmem:[%s11] sm:$0xff]
    %v1237 = vld [vmem:[%s11 + $0x8] sm:$0xff]
    %v1238 = vld [vmem:[%s11 + $0x10] sm:$0xff]
    %v1239 = vld [vmem:[%s11 + $0x18] sm:$0xff]
    %v1240 = vld [vmem:[%s11 + $0x20] sm:$0xff]
    %v1241 = vld [vmem:[%s11 + $0x28] sm:$0xff]
    %v1242 = vld [vmem:[%s11 + $0x30] sm:$0xff]
    %v1243 = vld [vmem:[%s11 + $0x38] sm:$0xff]
    %1245 = vset.pattern.permute.xlu0 0
    %1246 = vperm.xlu0 %1245, %v1236
    %v1247 = vpop.permute.xlu0 %1246
    %1250 = vset.pattern.permute.xlu0 0
    %1251 = vperm.xlu0 %1250, %v1237
    %v1252 = vpop.permute.xlu0 %1251
    %1255 = vset.pattern.permute.xlu0 0
    %1256 = vperm.xlu0 %1255, %v1238
    %v1257 = vpop.permute.xlu0 %1256
    %1260 = vset.pattern.permute.xlu0 0
    %1261 = vperm.xlu0 %1260, %v1239
    %v1262 = vpop.permute.xlu0 %1261
    %1265 = vset.pattern.permute.xlu0 0
    %1266 = vperm.xlu0 %1265, %v1240
    %v1267 = vpop.permute.xlu0 %1266
    %1270 = vset.pattern.permute.xlu0 0
    %1271 = vperm.xlu0 %1270, %v1241
    %v1272 = vpop.permute.xlu0 %1271
    %1275 = vset.pattern.permute.xlu0 0
    %1276 = vperm.xlu0 %1275, %v1242
    %v1277 = vpop.permute.xlu0 %1276
    %1280 = vset.pattern.permute.xlu0 0
    %1281 = vperm.xlu0 %1280, %v1243
    %v1282 = vpop.permute.xlu0 %1281
    %v1284 = vmul.f32 %v1228, %v1247
    %v1285 = vmul.f32 %v1229, %v1252
    %v1286 = vmul.f32 %v1230, %v1257
    %v1287 = vmul.f32 %v1231, %v1262
    %v1288 = vmul.f32 %v1232, %v1267
    %v1289 = vmul.f32 %v1233, %v1272
    %v1290 = vmul.f32 %v1234, %v1277
    %v1291 = vmul.f32 %v1235, %v1282
    %v1292 = vadd.f32 %v1284, %v1285
    %v1293 = vadd.f32 %v1292, %v1286
    %v1294 = vadd.f32 %v1293, %v1287
    %v1295 = vadd.f32 %v1294, %v1288
    %v1296 = vadd.f32 %v1295, %v1289
    %v1297 = vadd.f32 %v1296, %v1290
    %v1298 = vadd.f32 %v1297, %v1291
    %v1299 = vrot.slane %v1298, 4
    %v1300 = vadd.f32 %v1298, %v1299
    %v1301 = vrot.slane %v1300, 2
    %v1302 = vadd.f32 %v1300, %v1301
    %v1303 = vrot.slane %v1302, 1
    %v1304 = vadd.f32 %v1302, %v1303
    %v1305 = vld [vmem:[#allocation2] sm:$0x1]
    %1307 = vset.pattern.permute.xlu0 0
    %1308 = vperm.xlu0 %1307, %v1305
    %v1309 = vpop.permute.xlu0 %1308
    %v1311 = vlaneseq
    %v1312 = vshrl.u32 %v1311, 7
    %v1313 = vsub.s32 0, %v1312
    %v1314 = vrot.slane %v1309, %v1313
    %v1315 = vadd.f32 %v1304, %v1314
    %1316 = vst [vmem:[#allocation3] sm:$0x1] %v1315
    // Predicated region
    $region54: #{tpu_custom_call.1} parent=1 // pred_check
      _
    $region55: #{tpu_custom_call.1} parent=1 // pred_check_branch
      %1318 = sbr.rel (0) target = $region57
    $region56: #{tpu_custom_call.1} parent=1 // pred_region
      %s1320 = ssub.s32 16, 16
      %1321 = vsyncadd [#allocation4], %s1320
      %s1323 = sshll.u32 [#allocation3], 4
      %s1324 = int_to_ptr.vmem [resolvable:$true] %s1323
      %1326 = dma.vmem_to_hbm [thread:$0]  %s1324, 16, %s13, [#allocation4]
    $region57: #{tpu_custom_call.1} parent=1 // pred_fallthru
      _
    // Predicated region
    $region58: #{tpu_custom_call.1} parent=1 // pred_check
      _
    $region59: #{tpu_custom_call.1} parent=1 // pred_check_branch
      %1328 = sbr.rel (0) target = $region61
    $region60: #{tpu_custom_call.1} parent=1 // pred_region
      %1329 = dma.done [#allocation4], 16
    $region61: #{tpu_custom_call.1} parent=1 // pred_fallthru
      _
    %1330 = vsyncpa [#allocation4], 1

</llo_original>
